<compile_context>
chip_gen: v5e
topology: v5e:2x2
jax: 0.10.0
libtpu: 0.0.40
codegen_flags: <defaults>
</compile_context>

<pallas_src>
import math
from functools import partial

import jax
import jax.numpy as jnp
import numpy as np
from jax.experimental import pallas as pl
from jax.experimental.pallas import tpu as pltpu


def _identity_kernel(x_ref, o_ref):
    # Pure pass-through on the current VMEM tile.
    o_ref[...] = x_ref[...]


def _target_tile_bytes():
    """~4 MiB tiles on v6e/v7x, ~2 MiB on v5e (smaller default scoped VMEM)."""
    try:
        kind = jax.devices()[0].device_kind.lower()
    except Exception:  # pragma: no cover - defensive default
        kind = ""
    if "v5" in kind:
        return 2 << 20
    return 4 << 20


def _choose_layout(total, dtype):
    """Pick a lane-dense (rows, lane_width) bulk view and a row-tile size.

    Returns (rows, lane_width, tile_rows).  rows * lane_width is the
    128-aligned "bulk"; any remainder (< lane_width elements) is handled by
    the caller with plain XLA ops.  tile_rows is a multiple of the dtype's
    sublane pack (8 for 4-byte, 16 for 2-byte, 32 for 1-byte dtypes) unless it
    equals the full row extent.
    """
    itemsize = jnp.dtype(dtype).itemsize
    pack = {4: 8, 2: 16, 1: 32}.get(itemsize, 8)

    lane_width = None
    for lane in (2048, 1024, 512, 256, 128):
        if total >= lane:
            lane_width = lane
            break
    if lane_width is None:
        # Tiny tensor (< 128 elements): a single whole-array block is legal
        # (block equals full array dims) and trivially fits VMEM.
        return 1, total, 1

    rows = total // lane_width  # bulk rows; remainder handled by the caller

    target_bytes = _target_tile_bytes()
    tile_rows = max(pack, (target_bytes // (lane_width * itemsize)) // pack * pack)

    # v7x has 2 TensorCores per chip: keep >= ~4 grid steps (when the tensor
    # allows it) so the "parallel" axis can actually be sharded across them.
    max_tiles = max(1, rows // pack)
    min_steps = min(4, max_tiles)
    if min_steps > 1:
        cap = max(pack, (rows // min_steps) // pack * pack)
        tile_rows = min(tile_rows, cap)

    tile_rows = min(tile_rows, rows)
    return rows, lane_width, tile_rows


def _copy_2d(x2d, *, rows, lane_width, tile_rows, alias):
    """Tiled, software-pipelined identity copy of a lane-dense 2D view."""
    itemsize = jnp.dtype(x2d.dtype).itemsize
    tile_bytes = tile_rows * lane_width * itemsize
    # 2 input + 2 output double-buffered tiles, plus headroom; stays far below
    # physical VMEM on every generation (64 MiB v7x / 128 MiB v5e, v6e).
    vmem_limit = int(min(100 << 20, max(16 << 20, 4 * tile_bytes + (4 << 20))))

    return pl.pallas_call(
        _identity_kernel,
        out_shape=jax.ShapeDtypeStruct((rows, lane_width), x2d.dtype),
        grid=(pl.cdiv(rows, tile_rows),),
        in_specs=[pl.BlockSpec((tile_rows, lane_width), lambda i: (i, 0))],
        out_specs=pl.BlockSpec((tile_rows, lane_width), lambda i: (i, 0)),
        # Only force the alias when the jit-level input is donated; otherwise
        # XLA would insert a defensive copy of x to make the alias safe.
        input_output_aliases={0: 0} if alias else {},
        compiler_params=pltpu.CompilerParams(
            dimension_semantics=("parallel",),  # shard copy across v7x's 2 TCs
            vmem_limit_bytes=vmem_limit,
        ),
    )(x2d)


def _identity_impl(x, *, rows, lane_width, tile_rows, out_shape, alias):
    total = math.prod(out_shape)
    bulk = rows * lane_width
    flat = x.reshape(total)

    if bulk == total:
        # Exact lane-dense reshape: whole tensor goes through the kernel.
        y2d = _copy_2d(
            flat.reshape(rows, lane_width),
            rows=rows, lane_width=lane_width, tile_rows=tile_rows, alias=alias,
        )
        return y2d.reshape(out_shape)

    # Non-multiple-of-lane fallback: kernel copies the aligned bulk; the tiny
    # remainder (< lane_width elements) is handled by plain XLA concat.
    y_bulk = _copy_2d(
        flat[:bulk].reshape(rows, lane_width),
        rows=rows, lane_width=lane_width, tile_rows=tile_rows, alias=False,
    ).reshape(bulk)
    return jnp.concatenate([y_bulk, flat[bulk:]]).reshape(out_shape)


_STATIC = ("rows", "lane_width", "tile_rows", "out_shape", "alias")

_identity_jit = jax.jit(_identity_impl, static_argnames=_STATIC)
_identity_jit_donated = jax.jit(
    _identity_impl, static_argnames=_STATIC, donate_argnums=(0,)
)


def debug_module_forward(x, donate_input=True):
    """Equivalent of DebugModule.forward: print(x.shape); return x.

    With donate_input=True (default) the input buffer is donated so the
    Pallas output aliases it in place (zero extra HBM copies); like PyTorch's
    `return x`, the caller should use the returned array from then on.
    """
    # Host-side print on every call (eager wrapper, not traced away).
    print(x.shape)

    total = math.prod(x.shape)
    if total == 0:
        # Degenerate input: nothing to copy.
        return x

    rows, lane_width, tile_rows = _choose_layout(total, x.dtype)
    aligned = rows * lane_width == total
    alias = bool(aligned and donate_input)

    kwargs = dict(
        rows=rows,
        lane_width=lane_width,
        tile_rows=tile_rows,
        out_shape=tuple(x.shape),
        alias=alias,
    )
    if alias:
        return _identity_jit_donated(x, **kwargs)
    return _identity_jit(x, **kwargs)


if __name__ == "__main__":
    key = jax.random.PRNGKey(0)
    # Small NCHW input consistent with a conv-style module input.
    x = jax.random.normal(key, (2, 4, 16, 16), dtype=jnp.float32)

    # Snapshot to host for verification: x's device buffer is donated below.
    x_host = np.asarray(x)

    y = debug_module_forward(x)          # prints the shape, returns identity
    y = jax.block_until_ready(y)

    assert y.shape == x_host.shape and y.dtype == x_host.dtype
    assert np.array_equal(np.asarray(y), x_host)

    # Exercise the non-donated and unaligned (non-multiple-of-128) paths too.
    x2 = jax.random.normal(jax.random.PRNGKey(1), (3, 5, 7), dtype=jnp.float32)
    y2 = jax.block_until_ready(debug_module_forward(x2, donate_input=False))
    assert np.array_equal(np.asarray(y2), np.asarray(x2))

    print("KERNEL_OK")
</pallas_src>

<mosaic_0001>
module attributes {stable_mosaic.version = 11 : i64} {
  func.func @_identity_kernel(%arg0: i32, %arg1: memref<1x2048xf32, #tpu.memory_space<vmem>>, %arg2: memref<1x2048xf32, #tpu.memory_space<vmem>>) attributes {dimension_semantics = [#tpu.dimension_semantics<parallel>], iteration_bounds = array<i64: 1>, scalar_prefetch = 0 : i64, scratch_operands = 0 : i64, tpu.core_type = #tpu.core_type<tc>, window_params = [{transform_indices = @transform_0, window_bounds = array<i64: 1, 2048>}, {transform_indices = @transform_1, window_bounds = array<i64: 1, 2048>}]} {
    %c0 = arith.constant 0 : index
    %c0_0 = arith.constant 0 : index
    %0 = vector.load %arg1[%c0, %c0_0] : memref<1x2048xf32, #tpu.memory_space<vmem>>, vector<1x2048xf32>
    %c0_1 = arith.constant 0 : index
    %c0_2 = arith.constant 0 : index
    %1 = vector.load %arg2[%c0_1, %c0_2] : memref<1x2048xf32, #tpu.memory_space<vmem>>, vector<1x2048xf32>
    tpu.vector_store %arg2[%c0_1, %c0_2], %0 {strides = array<i32>} : memref<1x2048xf32, #tpu.memory_space<vmem>>, vector<1x2048xf32>,
    return
  }
  func.func @transform_0(%arg0: i32) -> (i32, i32) {
    %c0_i32 = arith.constant 0 : i32
    %c0_i32_0 = arith.constant 0 : i32
    return %arg0, %c0_i32 : i32, i32
  }
  func.func @transform_1(%arg0: i32) -> (i32, i32) {
    %c0_i32 = arith.constant 0 : i32
    %c0_i32_0 = arith.constant 0 : i32
    return %arg0, %c0_i32 : i32, i32
  }
}

</mosaic_0001>

<llo_original>
// kernel: _identity_impl.1
$region0: #{_identity_impl.1}
  #allocation0 [shape = 'u32[]', space=smem, size = 0x4, offset = 0x4, fixed_abs, tag = 'smem constant byte address 0x4 - core index']
  #allocation1 [shape = 'u32[72,128]{1,0:T(1,128)}', space=vmem, size = 0x9000, scoped, tag = 'internal scratch']
  %s0 = inlined_call_operand.vmem [shape: f32[1,2048], index: 0, kind: input, shape index: {}, may-alias: {0,1}]
  %s1 = inlined_call_operand.vmem [shape: f32[1,2048], index: 1, kind: output, shape index: {}, may-alias: {0,1}]
  %s2 = sld [smem:[#allocation0]]
  $region14: #{_identity_impl.1} parent=0
    _
  %s4 = ssub.s32 1, %s2
  %s5 = scalar_select 0, %s4, %s2
  // Predicated region
  $region2: #{_identity_impl.1} parent=0 // pred_check
    _
  $region3: #{_identity_impl.1} parent=0 // pred_check_branch
    %7 = sbr.rel (0) target = $region5
  $region4: #{_identity_impl.1} parent=0 // pred_region
    _
  $region5: #{_identity_impl.1} parent=0 // pred_fallthru
    _
  %v8 = vld [vmem:[%s0] sm:$0xff]
  %v9 = vld [vmem:[%s0 + $0x8] sm:$0xff]
  %10 = vst [vmem:[%s1] sm:$0xff] %v8
  %11 = vst [vmem:[%s1 + $0x8] sm:$0xff] %v9
  // Predicated region
  $region6: #{_identity_impl.1} parent=0 // pred_check
    _
  $region7: #{_identity_impl.1} parent=0 // pred_check_branch
    %13 = sbr.rel (0) target = $region9
  $region8: #{_identity_impl.1} parent=0 // pred_region
    _
  $region9: #{_identity_impl.1} parent=0 // pred_fallthru
    _
  // Predicated region
  $region10: #{_identity_impl.1} parent=0 // pred_check
    _
  $region11: #{_identity_impl.1} parent=0 // pred_check_branch
    %15 = sbr.rel (0) target = $region13
  $region12: #{_identity_impl.1} parent=0 // pred_region
    _
  $region13: #{_identity_impl.1} parent=0 // pred_fallthru
    _

</llo_original>
